<compile_context>
chip_gen: v7x
topology: tpu7x:2x2x1
jax: 0.10.0
libtpu: 0.0.40
codegen_flags: <defaults>
</compile_context>

<pallas_src>
import functools

import jax
import jax.numpy as jnp
from jax.experimental import pallas as pl
from jax.experimental.pallas import tpu as pltpu


def _round_up(x, m):
    return (x + m - 1) // m * m


def _cdiv(a, b):
    return (a + b - 1) // b


def _pick_tile(dim, target):
    """Divisor tile of `dim` (a 128-multiple), <= target, preferring
    256-multiples (v6e/v7x MXU passes are 256x256)."""
    best128, best256 = 128, 0
    t = 128
    lim = min(dim, target)
    while t <= lim:
        if dim % t == 0:
            best128 = t
            if t % 256 == 0:
                best256 = t
        t += 128
    return best256 or best128


@functools.lru_cache(maxsize=1)
def _vmem_ceiling_bytes():
    """Usable scoped-VMEM ceiling: physical capacity minus headroom for Mosaic
    internal scratch (64 MiB/TC on v7x, 128 MiB on v5e/v6e)."""
    try:
        cap = int(pltpu.get_tpu_info().vmem_capacity_bytes)
    except Exception:
        cap = 64 << 20  # conservative (v7x-sized) fallback
    return cap - max(8 << 20, cap // 8)


# ---------------------------------------------------------------------------
# Kernels
# ---------------------------------------------------------------------------
def _mlp_kernel_resident(x_ref, w1_ref, b1_ref, w2_ref, b2_ref, o_ref, *,
                         approx_gelu):
    """Weights fully VMEM-resident; one fused fc1 -> GELU -> fc2 per row tile."""
    h = jnp.dot(x_ref[...], w1_ref[...], preferred_element_type=jnp.float32)
    h = jax.nn.gelu(h + b1_ref[...], approximate=approx_gelu)
    out = jnp.dot(h.astype(w2_ref.dtype), w2_ref[...],
                  preferred_element_type=jnp.float32)
    o_ref[...] = (out + b2_ref[...]).astype(o_ref.dtype)


def _mlp_kernel_tiled(x_ref, w1_ref, b1_ref, w2_ref, b2_ref, o_ref, acc_ref, *,
                      approx_gelu):
    """Hidden dimension tiled as a reduction grid axis (weights streamed)."""
    j = pl.program_id(1)  # hidden-dim reduction axis (last, "arbitrary")

    @pl.when(j == 0)
    def _():
        acc_ref[...] = jnp.zeros_like(acc_ref)

    h = jnp.dot(x_ref[...], w1_ref[...], preferred_element_type=jnp.float32)
    h = jax.nn.gelu(h + b1_ref[...], approximate=approx_gelu)
    partial = jnp.dot(h.astype(w2_ref.dtype), w2_ref[...],
                      preferred_element_type=jnp.float32)

    last = pl.num_programs(1) - 1

    @pl.when(j != last)
    def _():
        acc_ref[...] += partial

    @pl.when(j == last)
    def _():
        # Fold the last partial + output bias straight into the store: saves a
        # full (tm, C_out) f32 round trip through the accumulator.
        o_ref[...] = (acc_ref[...] + partial + b2_ref[...]).astype(o_ref.dtype)


# ---------------------------------------------------------------------------
# Host-side wrappers
# ---------------------------------------------------------------------------
def prepare_mlp_params(w1, b1, w2, b2):
    """Pad to lane-dense (128-multiple) shapes and cast ONCE, at model init.

    Keeping this out of the per-call path avoids two extra HBM passes over the
    parameters on every forward.
    """
    C_in, H = w1.shape
    C_out = w2.shape[1]
    C_in_p, H_p, C_out_p = (_round_up(d, 128) for d in (C_in, H, C_out))
    w1_p = jnp.pad(w1.astype(jnp.bfloat16), ((0, C_in_p - C_in), (0, H_p - H)))
    b1_p = jnp.pad(b1.astype(jnp.float32), (0, H_p - H)).reshape(1, H_p)
    w2_p = jnp.pad(w2.astype(jnp.bfloat16), ((0, H_p - H), (0, C_out_p - C_out)))
    b2_p = jnp.pad(b2.astype(jnp.float32), (0, C_out_p - C_out)).reshape(1, C_out_p)
    return w1_p, b1_p, w2_p, b2_p


@functools.partial(jax.jit, static_argnames=("c_out", "tm", "approx_gelu"))
def mlp_pallas_prepared(x, w1_p, b1_p, w2_p, b2_p, *, c_out, tm=512,
                        approx_gelu=True):
    """x: (B, N, C_in); padded/casted params from prepare_mlp_params."""
    B, N, C_in = x.shape
    C_in_p, H_p = w1_p.shape
    C_out_p = w2_p.shape[1]
    M = B * N
    out_dtype = x.dtype
    out_itemsize = jnp.dtype(out_dtype).itemsize
    ceiling = _vmem_ceiling_bytes()

    # Row tile: multiple of 8; ensure >= 2 row tiles when M permits so the
    # "parallel" axis shards across both TensorCores on v7x.
    tm_eff = min(tm, _round_up(M, 8))
    if M > 8 and _round_up(M, tm_eff) // tm_eff < 2:
        tm_eff = _round_up(_cdiv(M, 2), 8)

    def resident_budget(tm_):
        per_buf = (tm_ * C_in_p * 2            # x tile (bf16)
                   + C_in_p * H_p * 2          # W1 (bf16, resident)
                   + H_p * 4                   # b1 (f32)
                   + H_p * C_out_p * 2         # W2 (bf16, resident)
                   + C_out_p * 4               # b2 (f32)
                   + tm_ * C_out_p * out_itemsize)   # out tile
        h_bytes = tm_ * H_p * (4 + 2)          # f32 fc1 intermediate + bf16 copy
        return 2 * per_buf + h_bytes + (2 << 20)

    # Prefer the resident-weight path: weights DMA'd once, kernel MXU-bound.
    use_resident = False
    tm_res = tm_eff
    while True:
        if resident_budget(tm_res) <= ceiling:
            use_resident = True
            break
        if tm_res <= 8:
            break
        tm_res = max(8, _round_up(tm_res // 2, 8))

    if use_resident:
        tm_eff = tm_res
        M_p = _round_up(M, tm_eff)
        x2 = jnp.pad(x.reshape(M, C_in).astype(jnp.bfloat16),
                     ((0, M_p - M), (0, C_in_p - C_in)))
        flops = 2 * M_p * C_in_p * H_p + 2 * M_p * H_p * C_out_p
        bytes_accessed = (M_p * C_in_p * 2 + C_in_p * H_p * 2 + H_p * 4
                          + H_p * C_out_p * 2 + C_out_p * 4
                          + M_p * C_out_p * out_itemsize)
        vmem_limit = int(min(max(resident_budget(tm_eff), 32 << 20), ceiling))

        out2 = pl.pallas_call(
            functools.partial(_mlp_kernel_resident, approx_gelu=approx_gelu),
            out_shape=jax.ShapeDtypeStruct((M_p, C_out_p), out_dtype),
            grid_spec=pltpu.PrefetchScalarGridSpec(
                num_scalar_prefetch=0,
                grid=(M_p // tm_eff,),
                in_specs=[
                    pl.BlockSpec((tm_eff, C_in_p), lambda i: (i, 0)),  # x rows
                    pl.BlockSpec((C_in_p, H_p), lambda i: (0, 0)),     # W1 resident
                    pl.BlockSpec((1, H_p), lambda i: (0, 0)),          # b1 resident
                    pl.BlockSpec((H_p, C_out_p), lambda i: (0, 0)),    # W2 resident
                    pl.BlockSpec((1, C_out_p), lambda i: (0, 0)),      # b2 resident
                ],
                out_specs=pl.BlockSpec((tm_eff, C_out_p), lambda i: (i, 0)),
            ),
            compiler_params=pltpu.CompilerParams(
                dimension_semantics=("parallel",),
                vmem_limit_bytes=vmem_limit,
            ),
            cost_estimate=pl.CostEstimate(
                flops=flops, transcendentals=M_p * H_p,
                bytes_accessed=bytes_accessed),
        )(x2, w1_p, b1_p, w2_p, b2_p)
    else:
        # Fallback: stream W1/W2 hidden slices (reduction axis last).
        th = _pick_tile(H_p, 512)

        def tiled_budget(tm_):
            per_buf = (tm_ * C_in_p * 2 + C_in_p * th * 2 + th * 4
                       + th * C_out_p * 2 + C_out_p * 4
                       + tm_ * C_out_p * out_itemsize)
            h_bytes = tm_ * th * (4 + 2)
            acc = tm_ * C_out_p * 4
            return 2 * per_buf + h_bytes + acc + (2 << 20)

        # Raise arithmetic intensity vs. weight streaming with big row tiles.
        tm_t = min(max(tm, 1024), _round_up(M, 8))
        if M > 8 and _round_up(M, tm_t) // tm_t < 2:
            tm_t = _round_up(_cdiv(M, 2), 8)
        while tiled_budget(tm_t) > ceiling and tm_t > 8:
            tm_t = max(8, _round_up(tm_t // 2, 8))
        tm_eff = tm_t
        M_p = _round_up(M, tm_eff)
        x2 = jnp.pad(x.reshape(M, C_in).astype(jnp.bfloat16),
                     ((0, M_p - M), (0, C_in_p - C_in)))
        n_j = H_p // th
        flops = 2 * M_p * C_in_p * H_p + 2 * M_p * H_p * C_out_p
        bytes_accessed = (M_p * C_in_p * 2
                          + (M_p // tm_eff) * (C_in_p * H_p * 2 + H_p * C_out_p * 2)
                          + H_p * 4 + C_out_p * 4
                          + M_p * C_out_p * out_itemsize)
        vmem_limit = int(min(max(tiled_budget(tm_eff), 32 << 20), ceiling))

        out2 = pl.pallas_call(
            functools.partial(_mlp_kernel_tiled, approx_gelu=approx_gelu),
            out_shape=jax.ShapeDtypeStruct((M_p, C_out_p), out_dtype),
            grid_spec=pltpu.PrefetchScalarGridSpec(
                num_scalar_prefetch=0,
                grid=(M_p // tm_eff, n_j),
                in_specs=[
                    pl.BlockSpec((tm_eff, C_in_p), lambda i, j: (i, 0)),
                    pl.BlockSpec((C_in_p, th), lambda i, j: (0, j)),
                    pl.BlockSpec((1, th), lambda i, j: (0, j)),
                    pl.BlockSpec((th, C_out_p), lambda i, j: (j, 0)),
                    pl.BlockSpec((1, C_out_p), lambda i, j: (0, 0)),
                ],
                out_specs=pl.BlockSpec((tm_eff, C_out_p), lambda i, j: (i, 0)),
                scratch_shapes=[pltpu.VMEM((tm_eff, C_out_p), jnp.float32)],
            ),
            compiler_params=pltpu.CompilerParams(
                dimension_semantics=("parallel", "arbitrary"),
                vmem_limit_bytes=vmem_limit,
            ),
            cost_estimate=pl.CostEstimate(
                flops=flops, transcendentals=M_p * H_p,
                bytes_accessed=bytes_accessed),
        )(x2, w1_p, b1_p, w2_p, b2_p)

    return out2[:M, :c_out].reshape(B, N, c_out)


def mlp_pallas(x, w1, b1, w2, b2, *, tm=512, approx_gelu=True):
    """Convenience wrapper (prepares params per call; prefer prepare_mlp_params
    + mlp_pallas_prepared when the layer is called repeatedly)."""
    w1_p, b1_p, w2_p, b2_p = prepare_mlp_params(w1, b1, w2, b2)
    return mlp_pallas_prepared(x, w1_p, b1_p, w2_p, b2_p, c_out=w2.shape[1],
                               tm=tm, approx_gelu=approx_gelu)


def mlp_reference(x, w1, b1, w2, b2):
    h = jnp.einsum("bnc,ch->bnh", x, w1) + b1
    h = jax.nn.gelu(h, approximate=False)   # torch.nn.GELU default (exact erf)
    return jnp.einsum("bnh,ho->bno", h, w2) + b2


if __name__ == "__main__":
    key = jax.random.PRNGKey(0)
    B, N = 2, 8
    in_features = 32
    hidden_features = 128
    out_features = 32  # out_features defaults to in_features in the module

    kx, k1, kb1, k2, kb2 = jax.random.split(key, 5)
    x = jax.random.normal(kx, (B, N, in_features), dtype=jnp.float32)

    # Deterministic param init (uniform like torch.nn.Linear's default range).
    lim1 = 1.0 / (in_features ** 0.5)
    lim2 = 1.0 / (hidden_features ** 0.5)
    w1 = jax.random.uniform(k1, (in_features, hidden_features),
                            minval=-lim1, maxval=lim1, dtype=jnp.float32)
    b1 = jax.random.uniform(kb1, (hidden_features,),
                            minval=-lim1, maxval=lim1, dtype=jnp.float32)
    w2 = jax.random.uniform(k2, (hidden_features, out_features),
                            minval=-lim2, maxval=lim2, dtype=jnp.float32)
    b2 = jax.random.uniform(kb2, (out_features,),
                            minval=-lim2, maxval=lim2, dtype=jnp.float32)

    # Weight padding / bf16 cast done once, outside the hot path.
    w1_p, b1_p, w2_p, b2_p = prepare_mlp_params(w1, b1, w2, b2)
    out = mlp_pallas_prepared(x, w1_p, b1_p, w2_p, b2_p, c_out=out_features)
    jax.block_until_ready(out)

    ref = mlp_reference(x, w1, b1, w2, b2)
    assert out.shape == (B, N, out_features)
    # bf16 matmul operands + tanh-approx GELU vs f32/erf reference -> loose tol.
    assert jnp.allclose(out, ref, atol=3e-2, rtol=3e-2), "mismatch vs reference"

    print("KERNEL_OK")
</pallas_src>

<mosaic_0001>
module attributes {stable_mosaic.version = 11 : i64} {
  func.func @_mlp_kernel_resident(%arg0: i32, %arg1: memref<8x128xbf16, #tpu.memory_space<vmem>>, %arg2: memref<128x128xbf16, #tpu.memory_space<vmem>>, %arg3: memref<1x128xf32, #tpu.memory_space<vmem>>, %arg4: memref<128x128xbf16, #tpu.memory_space<vmem>>, %arg5: memref<1x128xf32, #tpu.memory_space<vmem>>, %arg6: memref<8x128xf32, #tpu.memory_space<vmem>>) attributes {dimension_semantics = [#tpu.dimension_semantics<parallel>], iteration_bounds = array<i64: 2>, scalar_prefetch = 0 : i64, scratch_operands = 0 : i64, tpu.core_type = #tpu.core_type<tc>, window_params = [{transform_indices = @transform_0, window_bounds = array<i64: 8, 128>}, {pipeline_mode = #tpu.pipeline_mode<synchronous>, transform_indices = @transform_1, window_bounds = array<i64: 128, 128>}, {pipeline_mode = #tpu.pipeline_mode<synchronous>, transform_indices = @transform_2, window_bounds = array<i64: 1, 128>}, {pipeline_mode = #tpu.pipeline_mode<synchronous>, transform_indices = @transform_3, window_bounds = array<i64: 128, 128>}, {pipeline_mode = #tpu.pipeline_mode<synchronous>, transform_indices = @transform_4, window_bounds = array<i64: 1, 128>}, {transform_indices = @transform_5, window_bounds = array<i64: 8, 128>}]} {
    %c0 = arith.constant 0 : index
    %c0_0 = arith.constant 0 : index
    %0 = vector.load %arg1[%c0, %c0_0] : memref<8x128xbf16, #tpu.memory_space<vmem>>, vector<8x128xbf16>
    %c0_1 = arith.constant 0 : index
    %c0_2 = arith.constant 0 : index
    %1 = vector.load %arg2[%c0_1, %c0_2] : memref<128x128xbf16, #tpu.memory_space<vmem>>, vector<128x128xbf16>
    %cst = arith.constant dense<0.000000e+00> : vector<8x128xf32>
    %2 = tpu.matmul %0, %1, %cst {dimension_numbers = #tpu.dot_dimension_numbers<[1], [0], [0], [1], [0, 0, 1, 1], [], []>} : vector<8x128xbf16>, vector<128x128xbf16>, vector<8x128xf32> -> vector<8x128xf32>
    %c0_3 = arith.constant 0 : index
    %c0_4 = arith.constant 0 : index
    %3 = vector.load %arg3[%c0_3, %c0_4] : memref<1x128xf32, #tpu.memory_space<vmem>>, vector<1x128xf32>
    %4 = vector.broadcast %3 : vector<1x128xf32> to vector<8x128xf32>
    %5 = arith.addf %2, %4 : vector<8x128xf32>
    %6 = arith.mulf %5, %5 : vector<8x128xf32>
    %7 = arith.mulf %5, %6 : vector<8x128xf32>
    %cst_5 = arith.constant 4.471500e-02 : f32
    %8 = vector.broadcast %cst_5 : f32 to vector<8x128xf32>
    %9 = arith.mulf %8, %7 : vector<8x128xf32>
    %10 = arith.addf %5, %9 : vector<8x128xf32>
    %cst_6 = arith.constant 0.797884583 : f32
    %11 = vector.broadcast %cst_6 : f32 to vector<8x128xf32>
    %12 = arith.mulf %11, %10 : vector<8x128xf32>
    %13 = math.tanh %12 : vector<8x128xf32>
    %cst_7 = arith.constant 1.000000e+00 : f32
    %14 = vector.broadcast %cst_7 : f32 to vector<8x128xf32>
    %15 = arith.addf %14, %13 : vector<8x128xf32>
    %cst_8 = arith.constant 5.000000e-01 : f32
    %16 = vector.broadcast %cst_8 : f32 to vector<8x128xf32>
    %17 = arith.mulf %16, %15 : vector<8x128xf32>
    %18 = arith.mulf %5, %17 : vector<8x128xf32>
    %19 = arith.truncf %18 : vector<8x128xf32> to vector<8x128xbf16>
    %c0_9 = arith.constant 0 : index
    %c0_10 = arith.constant 0 : index
    %20 = vector.load %arg4[%c0_9, %c0_10] : memref<128x128xbf16, #tpu.memory_space<vmem>>, vector<128x128xbf16>
    %cst_11 = arith.constant dense<0.000000e+00> : vector<8x128xf32>
    %21 = tpu.matmul %19, %20, %cst_11 {dimension_numbers = #tpu.dot_dimension_numbers<[1], [0], [0], [1], [0, 0, 1, 1], [], []>} : vector<8x128xbf16>, vector<128x128xbf16>, vector<8x128xf32> -> vector<8x128xf32>
    %c0_12 = arith.constant 0 : index
    %c0_13 = arith.constant 0 : index
    %22 = vector.load %arg5[%c0_12, %c0_13] : memref<1x128xf32, #tpu.memory_space<vmem>>, vector<1x128xf32>
    %23 = vector.broadcast %22 : vector<1x128xf32> to vector<8x128xf32>
    %24 = arith.addf %21, %23 : vector<8x128xf32>
    %c0_14 = arith.constant 0 : index
    %c0_15 = arith.constant 0 : index
    %25 = vector.load %arg6[%c0_14, %c0_15] : memref<8x128xf32, #tpu.memory_space<vmem>>, vector<8x128xf32>
    tpu.vector_store %arg6[%c0_14, %c0_15], %24 {strides = array<i32>} : memref<8x128xf32, #tpu.memory_space<vmem>>, vector<8x128xf32>,
    return
  }
  func.func @transform_0(%arg0: i32) -> (i32, i32) {
    %c0_i32 = arith.constant 0 : i32
    %c0_i32_0 = arith.constant 0 : i32
    return %arg0, %c0_i32 : i32, i32
  }
  func.func @transform_1(%arg0: i32) -> (i32, i32) {
    %c0_i32 = arith.constant 0 : i32
    %c0_i32_0 = arith.constant 0 : i32
    %c0_i32_1 = arith.constant 0 : i32
    return %c0_i32, %c0_i32_0 : i32, i32
  }
  func.func @transform_2(%arg0: i32) -> (i32, i32) {
    %c0_i32 = arith.constant 0 : i32
    %c0_i32_0 = arith.constant 0 : i32
    %c0_i32_1 = arith.constant 0 : i32
    return %c0_i32, %c0_i32_0 : i32, i32
  }
  func.func @transform_3(%arg0: i32) -> (i32, i32) {
    %c0_i32 = arith.constant 0 : i32
    %c0_i32_0 = arith.constant 0 : i32
    %c0_i32_1 = arith.constant 0 : i32
    return %c0_i32, %c0_i32_0 : i32, i32
  }
  func.func @transform_4(%arg0: i32) -> (i32, i32) {
    %c0_i32 = arith.constant 0 : i32
    %c0_i32_0 = arith.constant 0 : i32
    %c0_i32_1 = arith.constant 0 : i32
    return %c0_i32, %c0_i32_0 : i32, i32
  }
  func.func @transform_5(%arg0: i32) -> (i32, i32) {
    %c0_i32 = arith.constant 0 : i32
    %c0_i32_0 = arith.constant 0 : i32
    return %arg0, %c0_i32 : i32, i32
  }
}

</mosaic_0001>

<llo_original>
// kernel: mlp_pallas_prepared.1
$region0: #{mlp_pallas_prepared.1}
  #allocation0 [shape = 'u32[]', space=smem, size = 0x4, offset = 0x4, fixed_abs, tag = 'smem constant byte address 0x4 - core index']
  #allocation1 [shape = 'u32[144,128]{1,0:T(1,128)}', space=vmem, size = 0x12000, scoped, tag = 'internal scratch']
  %s0 = inlined_call_operand.vmem [shape: bf16[16,128], index: 0, kind: input, shape index: {}]
  %s1 = inlined_call_operand.hbm [shape: bf16[128,128], index: 1, kind: input, shape index: {}]
  %s2 = inlined_call_operand.vmem [shape: f32[1,128], index: 2, kind: input, shape index: {}]
  %s3 = inlined_call_operand.hbm [shape: bf16[128,128], index: 3, kind: input, shape index: {}]
  %s4 = inlined_call_operand.vmem [shape: f32[1,128], index: 4, kind: input, shape index: {}]
  %s5 = inlined_call_operand.vmem [shape: f32[16,128], index: 5, kind: output, shape index: {}]
  %s6 = sld [smem:[#allocation0]]
  $region61: #{mlp_pallas_prepared.1} parent=0
    _
  %s8 = ssub.s32 1, %s6
  %s9 = scalar_select 0, %s8, %s6
  $region1: #{mlp_pallas_prepared.1} parent=0
    #allocation2 [shape = 'u8[32768]{0}', space=vmem, size = 0x8000, scoped, tag = 'input window, operand 1, single buffered']
    #allocation3 [shape = 's32[2]{0}', space=sflag, size = 0x8, scoped, tag = 'scoped memory for mlp_pallas_prepared.1']
    #allocation4 [shape = 'u8[32768]{0}', space=vmem, size = 0x8000, scoped, tag = 'input window, operand 3, single buffered']
    #allocation5 [shape = 's32[1]{0}', space=sflag, size = 0x4, scoped, tag = 'scoped memory for mlp_pallas_prepared.1']
    %10 = vsyncpa [#allocation3], 0
    %11 = vsyncpa [#allocation5], 0
    loop: start=0, step=1, limit=4
    $region2: #{mlp_pallas_prepared.1} parent=1 // loop_pre_header
      _
    $region3: #{mlp_pallas_prepared.1} parent=1 // loop_header
      %s13 = sphi 0, %s17
      %p14 = scmp.ge.s32.totalorder %s13, 4
      %s23 = sphi 0, %s25
      %s26 = sphi 0, %s23
      %s27 = sphi 0, %s26
      %s43 = sphi 0, %s27
      %s47 = sphi 0, %s47
      %s49 = sphi 0, %s47
      %s50 = sphi 0, %s49
      %s64 = sphi 0, %s50
      %s68 = sphi 0, %s68
      %s70 = sphi 0, %s68
      %s71 = sphi 0, %s70
      %s85 = sphi 0, %s71
      %s89 = sphi 0, %s89
      %s91 = sphi 0, %s89
      %s92 = sphi 0, %s91
      %s106 = sphi 0, %s92
      %s110 = sphi 0, %s110
      %s112 = sphi 0, %s110
      %s113 = sphi 0, %s112
      %s127 = sphi 0, %s113
      %s133 = sphi 0, %s135
      %s136 = sphi 0, %s133
      %s137 = sphi 0, %s136
      %s153 = sphi 0, %s137
    $region4: #{mlp_pallas_prepared.1} parent=1 // loop_header_branch
      %16 = sbr.rel (%p14) target = $region8
    $region5: #{mlp_pallas_prepared.1} parent=1 // loop_body
      %s18 = ssub.s32 %s13, 1
      %s19 = ssub.s32 %s13, 2
      %s20 = sadd.s32 %s13, 1
      %s21 = ssub.s32 %s13, %s20
      %p22 = scmp.eq.s32.totalorder %s21, 0
      %s24 = sadd.s32 %s23, 1
      %s25 = scalar_select %p22, %s23, %s24
      %p28 = pneg %p22
      %p29 = scmp.eq.s32.totalorder %s13, 1
      %p30 = por %p28, %p29
      %p31 = scmp.ne.s32.totalorder %s23, %s26
      %p32 = scmp.eq.s32.totalorder %s13, 0
      %p33 = por %p31, %p32
      %p34 = scmp.ne.s32.totalorder %s23, %s26
      %p35 = scmp.eq.s32.totalorder %s18, 1
      %p36 = por %p34, %p35
      %p37 = scmp.ne.s32.totalorder %s26, %s27
      %p38 = scmp.eq.s32.totalorder %s18, 0
      %p39 = por %p37, %p38
      %p40 = scmp.ne.s32.totalorder %s26, %s27
      %p41 = scmp.eq.s32.totalorder %s19, 1
      %p42 = por %p40, %p41
      %p44 = scmp.ne.s32.totalorder %s27, %s43
      %p45 = scmp.eq.s32.totalorder %s19, 0
      %p46 = por %p44, %p45
      %s48 = sadd.s32 %s47, 1
      %p51 = scmp.eq.s32.totalorder %s13, 1
      %p52 = scmp.ne.s32.totalorder %s47, %s49
      %p53 = scmp.eq.s32.totalorder %s13, 0
      %p54 = por %p52, %p53
      %p55 = scmp.ne.s32.totalorder %s47, %s49
      %p56 = scmp.eq.s32.totalorder %s18, 1
      %p57 = por %p55, %p56
      %p58 = scmp.ne.s32.totalorder %s49, %s50
      %p59 = scmp.eq.s32.totalorder %s18, 0
      %p60 = por %p58, %p59
      %p61 = scmp.ne.s32.totalorder %s49, %s50
      %p62 = scmp.eq.s32.totalorder %s19, 1
      %p63 = por %p61, %p62
      %p65 = scmp.ne.s32.totalorder %s50, %s64
      %p66 = scmp.eq.s32.totalorder %s19, 0
      %p67 = por %p65, %p66
      %s69 = sadd.s32 %s68, 1
      %p72 = scmp.eq.s32.totalorder %s13, 1
      %p73 = scmp.ne.s32.totalorder %s68, %s70
      %p74 = scmp.eq.s32.totalorder %s13, 0
      %p75 = por %p73, %p74
      %p76 = scmp.ne.s32.totalorder %s68, %s70
      %p77 = scmp.eq.s32.totalorder %s18, 1
      %p78 = por %p76, %p77
      %p79 = scmp.ne.s32.totalorder %s70, %s71
      %p80 = scmp.eq.s32.totalorder %s18, 0
      %p81 = por %p79, %p80
      %p82 = scmp.ne.s32.totalorder %s70, %s71
      %p83 = scmp.eq.s32.totalorder %s19, 1
      %p84 = por %p82, %p83
      %p86 = scmp.ne.s32.totalorder %s71, %s85
      %p87 = scmp.eq.s32.totalorder %s19, 0
      %p88 = por %p86, %p87
      %s90 = sadd.s32 %s89, 1
      %p93 = scmp.eq.s32.totalorder %s13, 1
      %p94 = scmp.ne.s32.totalorder %s89, %s91
      %p95 = scmp.eq.s32.totalorder %s13, 0
      %p96 = por %p94, %p95
      %p97 = scmp.ne.s32.totalorder %s89, %s91
      %p98 = scmp.eq.s32.totalorder %s18, 1
      %p99 = por %p97, %p98
      %p100 = scmp.ne.s32.totalorder %s91, %s92
      %p101 = scmp.eq.s32.totalorder %s18, 0
      %p102 = por %p100, %p101
      %p103 = scmp.ne.s32.totalorder %s91, %s92
      %p104 = scmp.eq.s32.totalorder %s19, 1
      %p105 = por %p103, %p104
      %p107 = scmp.ne.s32.totalorder %s92, %s106
      %p108 = scmp.eq.s32.totalorder %s19, 0
      %p109 = por %p107, %p108
      %s111 = sadd.s32 %s110, 1
      %p114 = scmp.eq.s32.totalorder %s13, 1
      %p115 = scmp.ne.s32.totalorder %s110, %s112
      %p116 = scmp.eq.s32.totalorder %s13, 0
      %p117 = por %p115, %p116
      %p118 = scmp.ne.s32.totalorder %s110, %s112
      %p119 = scmp.eq.s32.totalorder %s18, 1
      %p120 = por %p118, %p119
      %p121 = scmp.ne.s32.totalorder %s112, %s113
      %p122 = scmp.eq.s32.totalorder %s18, 0
      %p123 = por %p121, %p122
      %p124 = scmp.ne.s32.totalorder %s112, %s113
      %p125 = scmp.eq.s32.totalorder %s19, 1
      %p126 = por %p124, %p125
      %p128 = scmp.ne.s32.totalorder %s113, %s127
      %p129 = scmp.eq.s32.totalorder %s19, 0
      %p130 = por %p128, %p129
      %s131 = ssub.s32 %s13, %s20
      %p132 = scmp.eq.s32.totalorder %s131, 0
      %s134 = sadd.s32 %s133, 1
      %s135 = scalar_select %p132, %s133, %s134
      %p138 = pneg %p132
      %p139 = scmp.eq.s32.totalorder %s13, 1
      %p140 = por %p138, %p139
      %p141 = scmp.ne.s32.totalorder %s133, %s136
      %p142 = scmp.eq.s32.totalorder %s13, 0
      %p143 = por %p141, %p142
      %p144 = scmp.ne.s32.totalorder %s133, %s136
      %p145 = scmp.eq.s32.totalorder %s18, 1
      %p146 = por %p144, %p145
      %p147 = scmp.ne.s32.totalorder %s136, %s137
      %p148 = scmp.eq.s32.totalorder %s18, 0
      %p149 = por %p147, %p148
      %p150 = scmp.ne.s32.totalorder %s136, %s137
      %p151 = scmp.eq.s32.totalorder %s19, 1
      %p152 = por %p150, %p151
      %p154 = scmp.ne.s32.totalorder %s137, %s153
      %p155 = scmp.eq.s32.totalorder %s19, 0
      %p156 = por %p154, %p155
      %p157 = scmp.le.s32.totalorder 1, %s13
      %p158 = scmp.lt.s32.totalorder %s13, 3
      %p159 = pnand %p157, %p158
      %p160 = pneg %p159
      // Predicated region
      $region9: #{mlp_pallas_prepared.1} parent=5 // pred_check
        _
      $region10: #{mlp_pallas_prepared.1} parent=5 // pred_check_branch
        %162 = sbr.rel (%p159) target = $region12
      $region11: #{mlp_pallas_prepared.1} parent=5 // pred_region
        %s163 = ssub.s32 %s13, 1
        // Predicated region
        $region13: #{mlp_pallas_prepared.1} parent=11 // pred_check
          %p164 = pneg %p60
        $region14: #{mlp_pallas_prepared.1} parent=11 // pred_check_branch
          %166 = sbr.rel (%p164) target = $region16
        $region15: #{mlp_pallas_prepared.1} parent=11 // pred_region
          %s168 = ssub.s32 1024, 1024
          %169 = vsyncadd [#allocation3], %s168
          %s170 = sshll.u32 [#allocation2], 4
          %s171 = int_to_ptr.vmem [resolvable:$true] %s170
          %176 = dma.hbm_to_vmem [thread:$0]  %s1, 1024, %s171, [#allocation3], 64, 64, 4
        $region16: #{mlp_pallas_prepared.1} parent=11 // pred_fallthru
          _
        // Predicated region
        $region17: #{mlp_pallas_prepared.1} parent=11 // pred_check
          %p177 = pneg %p81
        $region18: #{mlp_pallas_prepared.1} parent=11 // pred_check_branch
          %179 = sbr.rel (%p177) target = $region20
        $region19: #{mlp_pallas_prepared.1} parent=11 // pred_region
          _
        $region20: #{mlp_pallas_prepared.1} parent=11 // pred_fallthru
          _
        // Predicated region
        $region21: #{mlp_pallas_prepared.1} parent=11 // pred_check
          %p180 = pneg %p102
        $region22: #{mlp_pallas_prepared.1} parent=11 // pred_check_branch
          %182 = sbr.rel (%p180) target = $region24
        $region23: #{mlp_pallas_prepared.1} parent=11 // pred_region
          %s184 = ssub.s32 1024, 1024
          %185 = vsyncadd [#allocation5], %s184
          %s186 = sshll.u32 [#allocation4], 4
          %s187 = int_to_ptr.vmem [resolvable:$true] %s186
          %192 = dma.hbm_to_vmem [thread:$0]  %s3, 1024, %s187, [#allocation5], 64, 64, 4
        $region24: #{mlp_pallas_prepared.1} parent=11 // pred_fallthru
          _
        // Predicated region
        $region25: #{mlp_pallas_prepared.1} parent=11 // pred_check
          %p193 = pneg %p123
        $region26: #{mlp_pallas_prepared.1} parent=11 // pred_check_branch
          %195 = sbr.rel (%p193) target = $region28
        $region27: #{mlp_pallas_prepared.1} parent=11 // pred_region
          _
        $region28: #{mlp_pallas_prepared.1} parent=11 // pred_fallthru
          _
      $region12: #{mlp_pallas_prepared.1} parent=5 // pred_fallthru
        _
      %p196 = scmp.lt.s32.totalorder %s13, 2
      // Predicated region
      $region29: #{mlp_pallas_prepared.1} parent=5 // pred_check
        %p197 = pneg %p196
      $region30: #{mlp_pallas_prepared.1} parent=5 // pred_check_branch
        %199 = sbr.rel (%p197) target = $region32
      $region31: #{mlp_pallas_prepared.1} parent=5 // pred_region
        // Predicated region
        $region33: #{mlp_pallas_prepared.1} parent=31 // pred_check
          %p200 = pneg %p33
        $region34: #{mlp_pallas_prepared.1} parent=31 // pred_check_branch
          %202 = sbr.rel (%p200) target = $region36
        $region35: #{mlp_pallas_prepared.1} parent=31 // pred_region
          %p203 = scmp.lt.s32.totalorder %s13, 1
          %s204 = scalar_select %p203, %s13, 1
          %s205 = smul.addr %s204, 4
          %s206 = scalar_lea.vmem %s0, %s205
        $region36: #{mlp_pallas_prepared.1} parent=31 // pred_fallthru
          _
      $region32: #{mlp_pallas_prepared.1} parent=5 // pred_fallthru
        _
      %p207 = scmp.le.s32.totalorder 1, %s13
      %p208 = scmp.lt.s32.totalorder %s13, 3
      %p209 = pnand %p207, %p208
      %p210 = pneg %p209
      // Predicated region
      $region37: #{mlp_pallas_prepared.1} parent=5 // pred_check
        _
      $region38: #{mlp_pallas_prepared.1} parent=5 // pred_check_branch
        %212 = sbr.rel (%p209) target = $region40
      $region39: #{mlp_pallas_prepared.1} parent=5 // pred_region
        %s213 = ssub.s32 %s13, 1
        // Predicated region
        $region41: #{mlp_pallas_prepared.1} parent=39 // pred_check
          %p214 = pneg %p60
        $region42: #{mlp_pallas_prepared.1} parent=39 // pred_check_branch
          %216 = sbr.rel (%p214) target = $region44
        $region43: #{mlp_pallas_prepared.1} parent=39 // pred_region
          %217 = dma.done [#allocation3], 1024
        $region44: #{mlp_pallas_prepared.1} parent=39 // pred_fallthru
          _
        // Predicated region
        $region45: #{mlp_pallas_prepared.1} parent=39 // pred_check
          %p218 = pneg %p102
        $region46: #{mlp_pallas_prepared.1} parent=39 // pred_check_branch
          %220 = sbr.rel (%p218) target = $region48
        $region47: #{mlp_pallas_prepared.1} parent=39 // pred_region
          %221 = dma.done [#allocation5], 1024
        $region48: #{mlp_pallas_prepared.1} parent=39 // pred_fallthru
          _
        %p222 = scmp.lt.s32.totalorder %s18, 1
        %s223 = scalar_select %p222, %s18, 1
        %s224 = smul.addr %s223, 4
        %s225 = scalar_lea.vmem %s0, %s224
        %p226 = pneg %p39
        %p227 = pneg %p36
        %p228 = pneg %p60
        %p229 = pneg %p57
        %p230 = pneg %p81
        %p231 = pneg %p78
        %p232 = pneg %p102
        %p233 = pneg %p99
        %p234 = pneg %p123
        %p235 = pneg %p120
        %p236 = pneg %p149
        %p237 = pneg %p146
        %p238 = scmp.lt.s32.totalorder %s18, 1
        %s239 = scalar_select %p238, %s18, 1
        %s240 = smul.addr %s239, 8
        %s241 = scalar_lea.vmem %s5, %s240
        %p242 = scmp.lt.s32.totalorder %s18, 1
        %s243 = scalar_select %p242, %s18, 1
        %s244 = smul.addr %s243, 4
        %s245 = scalar_lea.vmem %s0, %s244
        %p246 = scmp.lt.s32.totalorder %s18, 1
        %s247 = scalar_select %p246, %s18, 1
        %s248 = smul.addr %s247, 8
        %s249 = scalar_lea.vmem %s5, %s248
        %v251 = vld [vmem:[%s245] sm:$0xf]
        %v252 = vld [vmem:[#allocation2] sm:$0xf]
        %v253 = vld [vmem:[#allocation2 + $0x4] sm:$0xf]
        %v254 = vld [vmem:[#allocation2 + $0x8] sm:$0xf]
        %v255 = vld [vmem:[#allocation2 + $0xc] sm:$0xf]
        %v256 = vld [vmem:[#allocation2 + $0x10] sm:$0xf]
        %v257 = vld [vmem:[#allocation2 + $0x14] sm:$0xf]
        %v258 = vld [vmem:[#allocation2 + $0x18] sm:$0xf]
        %v259 = vld [vmem:[#allocation2 + $0x1c] sm:$0xf]
        %v260 = vld [vmem:[#allocation2 + $0x20] sm:$0xf]
        %v261 = vld [vmem:[#allocation2 + $0x24] sm:$0xf]
        %v262 = vld [vmem:[#allocation2 + $0x28] sm:$0xf]
        %v263 = vld [vmem:[#allocation2 + $0x2c] sm:$0xf]
        %v264 = vld [vmem:[#allocation2 + $0x30] sm:$0xf]
        %v265 = vld [vmem:[#allocation2 + $0x34] sm:$0xf]
        %v266 = vld [vmem:[#allocation2 + $0x38] sm:$0xf]
        %v267 = vld [vmem:[#allocation2 + $0x3c] sm:$0xf]
        %v268 = vld [vmem:[%s2] sm:$0x1]
        %v270 = vlaneseq
        %v271 = vshrl.u32 %v270, 7
        %v272 = vsub.s32 0, %v271
        %v273 = vrot.slane %v268, %v272
        %v291 = vunpack.c.l.b16 %v252
        %v292 = vunpack.c.l.b16 %v253
        %v293 = vunpack.c.l.b16 %v254
        %v294 = vunpack.c.l.b16 %v255
        %v295 = vunpack.c.l.b16 %v256
        %v296 = vunpack.c.l.b16 %v257
        %v297 = vunpack.c.l.b16 %v258
        %v298 = vunpack.c.l.b16 %v259
        %v299 = vunpack.c.l.b16 %v260
        %v300 = vunpack.c.l.b16 %v261
        %v301 = vunpack.c.l.b16 %v262
        %v302 = vunpack.c.l.b16 %v263
        %v303 = vunpack.c.l.b16 %v264
        %v304 = vunpack.c.l.b16 %v265
        %v305 = vunpack.c.l.b16 %v266
        %v306 = vunpack.c.l.b16 %v267
        %v307 = vpack.c.b16 %v292, %v291
        %v308 = vpack.c.b16 %v294, %v293
        %v309 = vpack.c.b16 %v296, %v295
        %v310 = vpack.c.b16 %v298, %v297
        %v311 = vpack.c.b16 %v300, %v299
        %v312 = vpack.c.b16 %v302, %v301
        %v313 = vpack.c.b16 %v304, %v303
        %v314 = vpack.c.b16 %v306, %v305
        %323 = vmatprep.subr.bf16.mxu0 0
        %324 = vmatpush1.bf16.msra.mxu0 %v307
        %325 = vmatprep.subr.bf16.mxu0 0
        %326 = vmatpush1.bf16.msra.mxu0 %v308
        %327 = vmatprep.subr.bf16.mxu0 0
        %328 = vmatpush1.bf16.msra.mxu0 %v309
        %329 = vmatprep.subr.bf16.mxu0 0
        %330 = vmatpush1.bf16.msra.mxu0 %v310
        %331 = vmatprep.subr.bf16.mxu0 0
        %332 = vmatpush1.bf16.msra.mxu0 %v311
        %333 = vmatprep.subr.bf16.mxu0 0
        %334 = vmatpush1.bf16.msra.mxu0 %v312
        %335 = vmatprep.subr.bf16.mxu0 0
        %336 = vmatpush1.bf16.msra.mxu0 %v313
        %337 = vmatprep.subr.bf16.mxu0 0
        %338 = vmatpush1.bf16.msra.mxu0 %v314
        %339 = vmatprep.subr.bf16.mxu0 0
        %340 = vmatpush1.bf16.msra.mxu0 0
        %341 = vmatprep.subr.bf16.mxu0 0
        %342 = vmatpush1.bf16.msra.mxu0 0
        %343 = vmatprep.subr.bf16.mxu0 0
        %344 = vmatpush1.bf16.msra.mxu0 0
        %345 = vmatprep.subr.bf16.mxu0 0
        %346 = vmatpush1.bf16.msra.mxu0 0
        %347 = vmatprep.subr.bf16.mxu0 0
        %348 = vmatpush1.bf16.msra.mxu0 0
        %349 = vmatprep.subr.bf16.mxu0 0
        %350 = vmatpush1.bf16.msra.mxu0 0
        %351 = vmatprep.subr.bf16.mxu0 0
        %352 = vmatpush1.bf16.msra.mxu0 0
        %353 = vmatprep.subr.bf16.mxu0 0
        %354 = vmatpush1.bf16.msra.mxu0 0
        %355 = vmatprep.mubr.bf16.mxu0 0
        %356 = vmatmul.mubr.bf16.gmra.mrb[0].mxu0 %v251
        %v357 = vpop.f32.mrb[0].mxu0
        %v358 = vadd.f32 %v273, %v357
        %v359 = vpop.f32.mrb[0].mxu0
        %v360 = vpop.f32.mrb[0].mxu0
        %v361 = vpop.f32.mrb[0].mxu0
        %362 = vdwg.mxu0
        %v363 = vmul.f32 %v358, %v358
        %v364 = vmul.f32 %v358, %v363
        %v365 = vmul.f32 %v364, 0.044715
        %v366 = vadd.f32 %v358, %v365
        %v367 = vmul.f32 %v366, 0.7978846
        %v368 = vtanh.pop %v367
        %v369 = vadd.f32 %v368, 1.0
        %v370 = vmul.f32 %v369, 0.5
        %v371 = vmul.f32 %v358, %v370
        %v372 = vpack.c.bf16 %v371, %v371
        %v373 = vld [vmem:[#allocation4] sm:$0xf]
        %v374 = vld [vmem:[#allocation4 + $0x4] sm:$0xf]
        %v375 = vld [vmem:[#allocation4 + $0x8] sm:$0xf]
        %v376 = vld [vmem:[#allocation4 + $0xc] sm:$0xf]
        %v377 = vld [vmem:[#allocation4 + $0x10] sm:$0xf]
        %v378 = vld [vmem:[#allocation4 + $0x14] sm:$0xf]
        %v379 = vld [vmem:[#allocation4 + $0x18] sm:$0xf]
        %v380 = vld [vmem:[#allocation4 + $0x1c] sm:$0xf]
        %v381 = vld [vmem:[#allocation4 + $0x20] sm:$0xf]
        %v382 = vld [vmem:[#allocation4 + $0x24] sm:$0xf]
        %v383 = vld [vmem:[#allocation4 + $0x28] sm:$0xf]
        %v384 = vld [vmem:[#allocation4 + $0x2c] sm:$0xf]
        %v385 = vld [vmem:[#allocation4 + $0x30] sm:$0xf]
        %v386 = vld [vmem:[#allocation4 + $0x34] sm:$0xf]
        %v387 = vld [vmem:[#allocation4 + $0x38] sm:$0xf]
        %v388 = vld [vmem:[#allocation4 + $0x3c] sm:$0xf]
        %v389 = vld [vmem:[%s4] sm:$0x1]
        %v391 = vlaneseq
        %v392 = vshrl.u32 %v391, 7
        %v393 = vsub.s32 0, %v392
        %v394 = vrot.slane %v389, %v393
        %v412 = vunpack.c.l.b16 %v373
        %v413 = vunpack.c.l.b16 %v374
        %v414 = vunpack.c.l.b16 %v375
        %v415 = vunpack.c.l.b16 %v376
        %v416 = vunpack.c.l.b16 %v377
        %v417 = vunpack.c.l.b16 %v378
        %v418 = vunpack.c.l.b16 %v379
        %v419 = vunpack.c.l.b16 %v380
        %v420 = vunpack.c.l.b16 %v381
        %v421 = vunpack.c.l.b16 %v382
        %v422 = vunpack.c.l.b16 %v383
        %v423 = vunpack.c.l.b16 %v384
        %v424 = vunpack.c.l.b16 %v385
        %v425 = vunpack.c.l.b16 %v386
        %v426 = vunpack.c.l.b16 %v387
        %v427 = vunpack.c.l.b16 %v388
        %v428 = vpack.c.b16 %v413, %v412
        %v429 = vpack.c.b16 %v415, %v414
        %v430 = vpack.c.b16 %v417, %v416
        %v431 = vpack.c.b16 %v419, %v418
        %v432 = vpack.c.b16 %v421, %v420
        %v433 = vpack.c.b16 %v423, %v422
        %v434 = vpack.c.b16 %v425, %v424
        %v435 = vpack.c.b16 %v427, %v426
        %444 = vmatprep.subr.bf16.mxu0 0
        %445 = vmatpush1.bf16.msra.mxu0 %v428
        %446 = vmatprep.subr.bf16.mxu0 0
        %447 = vmatpush1.bf16.msra.mxu0 %v429
        %448 = vmatprep.subr.bf16.mxu0 0
        %449 = vmatpush1.bf16.msra.mxu0 %v430
        %450 = vmatprep.subr.bf16.mxu0 0
        %451 = vmatpush1.bf16.msra.mxu0 %v431
        %452 = vmatprep.subr.bf16.mxu0 0
        %453 = vmatpush1.bf16.msra.mxu0 %v432
        %454 = vmatprep.subr.bf16.mxu0 0
        %455 = vmatpush1.bf16.msra.mxu0 %v433
        %456 = vmatprep.subr.bf16.mxu0 0
        %457 = vmatpush1.bf16.msra.mxu0 %v434
        %458 = vmatprep.subr.bf16.mxu0 0
        %459 = vmatpush1.bf16.msra.mxu0 %v435
        %460 = vmatprep.subr.bf16.mxu0 0
        %461 = vmatpush1.bf16.msra.mxu0 0
        %462 = vmatprep.subr.bf16.mxu0 0
        %463 = vmatpush1.bf16.msra.mxu0 0
        %464 = vmatprep.subr.bf16.mxu0 0
        %465 = vmatpush1.bf16.msra.mxu0 0
        %466 = vmatprep.subr.bf16.mxu0 0
        %467 = vmatpush1.bf16.msra.mxu0 0
        %468 = vmatprep.subr.bf16.mxu0 0
        %469 = vmatpush1.bf16.msra.mxu0 0
        %470 = vmatprep.subr.bf16.mxu0 0
        %471 = vmatpush1.bf16.msra.mxu0 0
        %472 = vmatprep.subr.bf16.mxu0 0
        %473 = vmatpush1.bf16.msra.mxu0 0
        %474 = vmatprep.subr.bf16.mxu0 0
        %475 = vmatpush1.bf16.msra.mxu0 0
        %476 = vmatprep.mubr.bf16.mxu0 0
        %477 = vmatmul.mubr.bf16.gmra.mrb[0].mxu0 %v372
        %v478 = vpop.f32.mrb[0].mxu0
        %v479 = vadd.f32 %v394, %v478
        %v480 = vpop.f32.mrb[0].mxu0
        %v481 = vpop.f32.mrb[0].mxu0
        %v482 = vpop.f32.mrb[0].mxu0
        %483 = vdwg.mxu0
        %484 = vst [vmem:[%s249] sm:$0xff] %v479
        %p485 = scmp.lt.s32.totalorder %s18, 1
        %s486 = scalar_select %p485, %s18, 1
        %s487 = smul.addr %s486, 8
        %s488 = scalar_lea.vmem %s5, %s487
        // Predicated region
        $region49: #{mlp_pallas_prepared.1} parent=39 // pred_check
          %p489 = pneg %p146
        $region50: #{mlp_pallas_prepared.1} parent=39 // pred_check_branch
          %491 = sbr.rel (%p489) target = $region52
        $region51: #{mlp_pallas_prepared.1} parent=39 // pred_region
          _
        $region52: #{mlp_pallas_prepared.1} parent=39 // pred_fallthru
          _
      $region40: #{mlp_pallas_prepared.1} parent=5 // pred_fallthru
        _
      %p492 = scmp.le.s32.totalorder 2, %s13
      // Predicated region
      $region53: #{mlp_pallas_prepared.1} parent=5 // pred_check
        %p493 = pneg %p492
      $region54: #{mlp_pallas_prepared.1} parent=5 // pred_check_branch
        %495 = sbr.rel (%p493) target = $region56
      $region55: #{mlp_pallas_prepared.1} parent=5 // pred_region
        %s496 = ssub.s32 %s13, 2
        // Predicated region
        $region57: #{mlp_pallas_prepared.1} parent=55 // pred_check
          %p497 = pneg %p152
        $region58: #{mlp_pallas_prepared.1} parent=55 // pred_check_branch
          %499 = sbr.rel (%p497) target = $region60
        $region59: #{mlp_pallas_prepared.1} parent=55 // pred_region
          %p500 = scmp.lt.s32.totalorder %s19, 1
          %s501 = scalar_select %p500, %s19, 1
          %s502 = smul.addr %s501, 8
          %s503 = scalar_lea.vmem %s5, %s502
        $region60: #{mlp_pallas_prepared.1} parent=55 // pred_fallthru
          _
      $region56: #{mlp_pallas_prepared.1} parent=5 // pred_fallthru
        _
    $region6: #{mlp_pallas_prepared.1} parent=1 // loop_footer
      %s17 = sadd.s32 1, %s13
    $region7: #{mlp_pallas_prepared.1} parent=1 // loop_footer_branch
      %12 = sbr.rel target = $region3
    $region8: #{mlp_pallas_prepared.1} parent=1 // loop_exit
      _
    %504 = vsyncpa [#allocation3], 1
    %s505 = scalar_lea.sflag [#allocation3], 1
    %506 = vsyncpa %s505, 1
    %507 = vsyncpa [#allocation5], 1

</llo_original>
